<compile_context>
chip_gen: v7x
topology: tpu7x:2x2x1
jax: 0.10.0
libtpu: 0.0.40
codegen_flags: <defaults>
</compile_context>

<pallas_src>
import functools
import numpy as np
import jax
import jax.numpy as jnp
from jax.experimental import pallas as pl
from jax.experimental.pallas import tpu as pltpu


def _cdiv(a, b):
    return -(-a // b)


def _round_up(a, b):
    return _cdiv(a, b) * b


def _vmem_budget():
    """Returns (vmem_limit_bytes, input+temp byte budget), sized per TPU generation."""
    cap = None
    try:
        cap = getattr(pltpu.get_tpu_info(), "vmem_capacity_bytes", None)
    except Exception:
        cap = None
    if not cap:
        cap = 64 * 1024 * 1024                      # conservative (v7x per-core VMEM)
    vmem_limit = int(min((cap * 3) // 4, 64 * 1024 * 1024))   # 48 MiB v7x, 64 MiB v5e/v6e
    budget = int(max(8 * 1024 * 1024, vmem_limit - 4 * 1024 * 1024))
    return vmem_limit, budget


def _sumsq_kernel_3d(pred_ref, target_ref, out_ref, acc_ref, *, total_rows, ragged):
    """Blocks: pred/target (nb, rt, 128); out (1, nb, 1); acc scratch (nb, 128) f32."""
    s = pl.program_id(1)
    r = pl.program_id(2)
    nr = pl.num_programs(2)

    @pl.when(r == 0)
    def _():
        acc_ref[...] = jnp.zeros_like(acc_ref)

    d = pred_ref[...].astype(jnp.float32) - target_ref[...].astype(jnp.float32)
    if ragged:
        # Mask the diff (before squaring) on rows past the true row count; the last
        # (partial) block may contain undefined padded data.
        rt = pred_ref.shape[1]
        rows = (s * nr + r) * rt + jax.lax.broadcasted_iota(jnp.int32, d.shape, 1)
        d = jnp.where(rows < total_rows, d, 0.0)
    # Lane-dense accumulation; cross-lane reduce + narrow store only on last step.
    acc_ref[...] += jnp.sum(d * d, axis=1)

    @pl.when(r == nr - 1)
    def _():
        out_ref[0] = jnp.sum(acc_ref[...], axis=1, keepdims=True)


def _sumsq_kernel_2d(pred_ref, target_ref, out_ref, acc_ref, *, total_cols, ragged):
    """Blocks: pred/target (nb, td); out (1, nb, 1); acc scratch (nb, 1) f32."""
    s = pl.program_id(1)
    c = pl.program_id(2)
    nc = pl.num_programs(2)

    @pl.when(c == 0)
    def _():
        acc_ref[...] = jnp.zeros_like(acc_ref)

    d = pred_ref[...].astype(jnp.float32) - target_ref[...].astype(jnp.float32)
    if ragged:
        # Global lane-index mask on the ragged tail (no jnp.pad in HBM).
        td = pred_ref.shape[1]
        cols = (s * nc + c) * td + jax.lax.broadcasted_iota(jnp.int32, d.shape, 1)
        d = jnp.where(cols < total_cols, d, 0.0)
    acc_ref[...] += jnp.sum(d * d, axis=1, keepdims=True)

    @pl.when(c == nc - 1)
    def _():
        out_ref[0] = acc_ref[...]


def _per_sample_sumsq(pred2d, target2d):
    """pred2d/target2d: (N, D) any float dtype. Returns (N,) f32 per-sample sum sq diff."""
    n, d = pred2d.shape
    itemsize = jnp.dtype(pred2d.dtype).itemsize
    vmem_limit, budget = _vmem_budget()

    # Batch block: 8 when it divides N (dense sublanes + multiple parallel batch
    # blocks for larger N); otherwise the whole batch (output (8,128) rule).
    nb = 8 if (n % 8 == 0) else n
    n_batch_blocks = n // nb

    use_3d = (d % 128 == 0)
    if use_3d:
        # Repack per-sample pixels onto (rows, 128 lanes): dense even at tiny batch.
        r_rows = d // 128
        # Budget: 2 inputs x 2 pipeline buffers + 2 full-block f32 temporaries.
        per_row = (2 * 2 * itemsize + 2 * 4) * nb * 128
        rt_max = max(8, (budget // per_row) // 8 * 8)
        tile = r_rows if r_rows <= rt_max else rt_max            # full dim or 8-multiple
        n_red = _cdiv(r_rows, tile)
        ragged = (r_rows % tile) != 0
        a = pred2d.reshape(n, r_rows, 128)
        b = target2d.reshape(n, r_rows, 128)
        kern = functools.partial(_sumsq_kernel_3d, total_rows=r_rows, ragged=ragged)
        acc_shape = pltpu.VMEM((nb, 128), jnp.float32)
    else:
        # Flat (N, D): nb < 8 wastes sublanes, but stays correct and avoids any
        # padded HBM copy; account for the sublane padding in the VMEM budget.
        nb_pad = _round_up(nb, 8)
        per_grp = (2 * 2 * itemsize + 2 * 4) * nb_pad * 128      # per 128 lanes
        td_max = max(128, (budget // per_grp) * 128)
        tile = d if d <= td_max else td_max                      # full dim or 128-mult
        n_red = _cdiv(d, tile)
        ragged = (d % tile) != 0
        a, b = pred2d, target2d
        kern = functools.partial(_sumsq_kernel_2d, total_cols=d, ragged=ragged)
        acc_shape = pltpu.VMEM((nb, 1), jnp.float32)

    # Guarantee >=2 blocks on a 'parallel' grid axis for v7x's second TensorCore:
    # if the batch axis collapses to one block, split the reduction into 2 partials
    # (only when it splits evenly; harmless on single-TC v5e/v6e).
    n_split = 2 if (n_batch_blocks == 1 and n_red >= 2 and n_red % 2 == 0) else 1
    n_steps = n_red // n_split

    if use_3d:
        in_spec = pl.BlockSpec((nb, tile, 128), lambda bb, s, r: (bb, s * n_steps + r, 0))
    else:
        in_spec = pl.BlockSpec((nb, tile), lambda bb, s, r: (bb, s * n_steps + r))

    out = pl.pallas_call(
        kern,
        out_shape=jax.ShapeDtypeStruct((n_split, n, 1), jnp.float32),
        grid_spec=pltpu.PrefetchScalarGridSpec(
            num_scalar_prefetch=0,
            grid=(n_batch_blocks, n_split, n_steps),
            in_specs=[in_spec, in_spec],
            out_specs=pl.BlockSpec((1, nb, 1), lambda bb, s, r: (s, bb, 0)),
            scratch_shapes=[acc_shape],
        ),
        compiler_params=pltpu.CompilerParams(
            dimension_semantics=("parallel", "parallel", "arbitrary"),
            vmem_limit_bytes=vmem_limit,
        ),
    )(a, b)

    # Combine per-core partials (n_split=1 in the common case).
    return jnp.sum(out, axis=0)[:, 0]


class PSNRLossPallas:
    """JAX/Pallas equivalent of the PyTorch PSNRLoss module (forward only)."""

    def __init__(self, loss_weight=1.0, reduction="mean", toY=False,
                 min_pallas_bytes=2 * 1024 * 1024):
        assert reduction == "mean"
        self.loss_weight = float(loss_weight)
        self.scale = 10.0 / np.log(10.0)
        self.toY = toY
        self.min_pallas_bytes = int(min_pallas_bytes)
        self.coef = jnp.asarray([65.481, 128.553, 24.966], jnp.float32).reshape(1, 3, 1, 1)

    def __call__(self, pred, target):
        assert pred.ndim == 4  # NCHW
        if self.toY:
            assert pred.shape[1] == 3, "toY=True requires 3-channel (RGB) inputs"
            # TODO(synk): fuse the RGB->Y coef-dot + /255 into the Pallas kernel (or use
            # CompilerParams(allow_input_fusion)) to avoid materializing (N,1,H,W) Y
            # intermediates in HBM; kept as plain-JAX glue matching the torch path.
            pred = (pred * self.coef).sum(axis=1, keepdims=True) + 16.0
            target = (target * self.coef).sum(axis=1, keepdims=True) + 16.0
            pred = pred / 255.0
            target = target / 255.0

        n = pred.shape[0]
        d = int(np.prod(pred.shape[1:]))
        pred2d = pred.reshape(n, d)        # layout-preserving (free) reshape
        target2d = target.reshape(n, d)

        total_bytes = 2 * n * d * jnp.dtype(pred.dtype).itemsize
        if total_bytes < self.min_pallas_bytes:
            # Small-problem bypass: kernel launch / pipeline-fill overhead dominates.
            diff = pred2d.astype(jnp.float32) - target2d.astype(jnp.float32)
            sumsq = jnp.sum(diff * diff, axis=1)
        else:
            sumsq = _per_sample_sumsq(pred2d, target2d)

        mse = sumsq / jnp.float32(d)
        loss = jnp.mean(jnp.log(mse + 1e-8))
        return jnp.float32(self.loss_weight) * jnp.float32(self.scale) * loss


if __name__ == "__main__":
    key = jax.random.PRNGKey(0)
    k1, k2, k3, k4 = jax.random.split(key, 4)

    # Force the Pallas path at small demo shapes (default threshold would bypass).
    loss_fn = PSNRLossPallas(loss_weight=1.0, reduction="mean", toY=False,
                             min_pallas_bytes=0)

    def ref_loss(p, t):
        mse = jnp.mean((p.astype(jnp.float32) - t.astype(jnp.float32)) ** 2, axis=(1, 2, 3))
        return (10.0 / np.log(10.0)) * jnp.mean(jnp.log(mse + 1e-8))

    # 1) C*H*W divisible by 128 -> dense (N, R, 128) kernel path.
    pred = jax.random.uniform(k1, (2, 4, 16, 16), dtype=jnp.float32)
    target = jax.random.uniform(k2, (2, 4, 16, 16), dtype=jnp.float32)
    out = jax.block_until_ready(loss_fn(pred, target))
    np.testing.assert_allclose(np.asarray(out), np.asarray(ref_loss(pred, target)),
                               rtol=1e-5, atol=1e-6)

    # 2) C*H*W NOT divisible by 128 -> flat (N, D) kernel path (no jnp.pad copy).
    pred_r = jax.random.uniform(k3, (2, 3, 10, 10), dtype=jnp.float32)
    target_r = jax.random.uniform(k4, (2, 3, 10, 10), dtype=jnp.float32)
    out_r = jax.block_until_ready(loss_fn(pred_r, target_r))
    np.testing.assert_allclose(np.asarray(out_r), np.asarray(ref_loss(pred_r, target_r)),
                               rtol=1e-5, atol=1e-6)

    # 3) Default instance exercises the small-problem bypass (plain jnp) and agrees.
    out_bypass = jax.block_until_ready(PSNRLossPallas()(pred, target))
    np.testing.assert_allclose(np.asarray(out_bypass), np.asarray(out),
                               rtol=1e-5, atol=1e-6)

    print("KERNEL_OK")
</pallas_src>

<mosaic_0001>
module attributes {stable_mosaic.version = 11 : i64} {
  func.func @_sumsq_kernel_3d(%arg0: i32, %arg1: i32, %arg2: i32, %arg3: memref<2x8x128xf32, #tpu.memory_space<vmem>>, %arg4: memref<2x8x128xf32, #tpu.memory_space<vmem>>, %arg5: memref<1x2x1xf32, #tpu.memory_space<vmem>>, %arg6: memref<2x128xf32, #tpu.memory_space<vmem>>) attributes {dimension_semantics = [#tpu.dimension_semantics<parallel>, #tpu.dimension_semantics<parallel>, #tpu.dimension_semantics<arbitrary>], iteration_bounds = array<i64: 1, 1, 1>, scalar_prefetch = 0 : i64, scratch_operands = 1 : i64, tpu.core_type = #tpu.core_type<tc>, window_params = [{transform_indices = @transform_0, window_bounds = array<i64: 2, 8, 128>}, {transform_indices = @transform_1, window_bounds = array<i64: 2, 8, 128>}, {transform_indices = @transform_2, window_bounds = array<i64: 1, 2, 1>}]} {
    %c0_i32 = arith.constant 0 : i32
    %0 = arith.cmpi eq, %arg2, %c0_i32 : i32
    %1 = arith.extui %0 : i1 to i32
    %c0_i32_0 = arith.constant 0 : i32
    %2 = arith.cmpi ne, %1, %c0_i32_0 : i32
    scf.if %2 {
      %cst_12 = arith.constant 0.000000e+00 : f32
      %14 = vector.broadcast %cst_12 : f32 to vector<2x128xf32>
      %c0_13 = arith.constant 0 : index
      %c0_14 = arith.constant 0 : index
      %15 = vector.load %arg6[%c0_13, %c0_14] : memref<2x128xf32, #tpu.memory_space<vmem>>, vector<2x128xf32>
      tpu.vector_store %arg6[%c0_13, %c0_14], %14 {strides = array<i32>} : memref<2x128xf32, #tpu.memory_space<vmem>>, vector<2x128xf32>,
    } else {
    }
    %c0 = arith.constant 0 : index
    %c0_1 = arith.constant 0 : index
    %c0_2 = arith.constant 0 : index
    %3 = vector.load %arg3[%c0, %c0_1, %c0_2] : memref<2x8x128xf32, #tpu.memory_space<vmem>>, vector<2x8x128xf32>
    %c0_3 = arith.constant 0 : index
    %c0_4 = arith.constant 0 : index
    %c0_5 = arith.constant 0 : index
    %4 = vector.load %arg4[%c0_3, %c0_4, %c0_5] : memref<2x8x128xf32, #tpu.memory_space<vmem>>, vector<2x8x128xf32>
    %5 = arith.subf %3, %4 : vector<2x8x128xf32>
    %c0_6 = arith.constant 0 : index
    %c0_7 = arith.constant 0 : index
    %6 = vector.load %arg6[%c0_6, %c0_7] : memref<2x128xf32, #tpu.memory_space<vmem>>, vector<2x128xf32>
    %7 = arith.mulf %5, %5 : vector<2x8x128xf32>
    %cst = arith.constant dense<0.000000e+00> : vector<2x128xf32>
    %8 = vector.multi_reduction <add>, %7, %cst [1] : vector<2x8x128xf32> to vector<2x128xf32>
    %9 = arith.addf %6, %8 : vector<2x128xf32>
    %c0_8 = arith.constant 0 : index
    %c0_9 = arith.constant 0 : index
    %10 = vector.load %arg6[%c0_8, %c0_9] : memref<2x128xf32, #tpu.memory_space<vmem>>, vector<2x128xf32>
    tpu.vector_store %arg6[%c0_8, %c0_9], %9 {strides = array<i32>} : memref<2x128xf32, #tpu.memory_space<vmem>>, vector<2x128xf32>,
    %c0_i32_10 = arith.constant 0 : i32
    %11 = arith.cmpi eq, %arg2, %c0_i32_10 : i32
    %12 = arith.extui %11 : i1 to i32
    %c0_i32_11 = arith.constant 0 : i32
    %13 = arith.cmpi ne, %12, %c0_i32_11 : i32
    scf.if %13 {
      %c0_12 = arith.constant 0 : index
      %c0_13 = arith.constant 0 : index
      %14 = vector.load %arg6[%c0_12, %c0_13] : memref<2x128xf32, #tpu.memory_space<vmem>>, vector<2x128xf32>
      %cst_14 = arith.constant dense<0.000000e+00> : vector<2xf32>
      %15 = vector.multi_reduction <add>, %14, %cst_14 [1] : vector<2x128xf32> to vector<2xf32>
      %16 = vector.shape_cast %15 : vector<2xf32> to vector<2x1xf32>
      %c0_15 = arith.constant 0 : index
      %c0_16 = arith.constant 0 : index
      %c0_17 = arith.constant 0 : index
      %17 = vector.load %arg5[%c0_15, %c0_16, %c0_17] : memref<1x2x1xf32, #tpu.memory_space<vmem>>, vector<1x2x1xf32>
      %18 = vector.shape_cast %17 : vector<1x2x1xf32> to vector<2x1xf32>
      %19 = vector.shape_cast %16 : vector<2x1xf32> to vector<1x2x1xf32>
      tpu.vector_store %arg5[%c0_15, %c0_16, %c0_17], %19 {strides = array<i32>} : memref<1x2x1xf32, #tpu.memory_space<vmem>>, vector<1x2x1xf32>,
    } else {
    }
    return
  }
  func.func @transform_0(%arg0: i32, %arg1: i32, %arg2: i32) -> (i32, i32, i32) {
    %c1_i32 = arith.constant 1 : i32
    %0 = arith.muli %arg1, %c1_i32 : i32
    %1 = arith.addi %0, %arg2 : i32
    %c0_i32 = arith.constant 0 : i32
    %c0_i32_0 = arith.constant 0 : i32
    return %arg0, %1, %c0_i32 : i32, i32, i32
  }
  func.func @transform_1(%arg0: i32, %arg1: i32, %arg2: i32) -> (i32, i32, i32) {
    %c1_i32 = arith.constant 1 : i32
    %0 = arith.muli %arg1, %c1_i32 : i32
    %1 = arith.addi %0, %arg2 : i32
    %c0_i32 = arith.constant 0 : i32
    %c0_i32_0 = arith.constant 0 : i32
    return %arg0, %1, %c0_i32 : i32, i32, i32
  }
  func.func @transform_2(%arg0: i32, %arg1: i32, %arg2: i32) -> (i32, i32, i32) {
    %c0_i32 = arith.constant 0 : i32
    %c0_i32_0 = arith.constant 0 : i32
    return %arg1, %arg0, %c0_i32 : i32, i32, i32
  }
}

</mosaic_0001>

<llo_original>
// kernel: tpu_custom_call.1
$region0: #{tpu_custom_call.1}
  #allocation0 [shape = 'u32[]', space=smem, size = 0x4, offset = 0x4, fixed_abs, tag = 'smem constant byte address 0x4 - core index']
  #allocation1 [shape = 'u32[144,128]{1,0:T(1,128)}', space=vmem, size = 0x12000, scoped, tag = 'internal scratch']
  #allocation2 [shape = 'f32[2,128]{1,0:T(2,128)}', space=vmem, size = 0x400, scoped, tag = 'scratch operand']
  %s0 = inlined_call_operand.hbm [shape: f32[2,8,128], index: 0, kind: input, shape index: {}]
  %s1 = inlined_call_operand.hbm [shape: f32[2,8,128], index: 1, kind: input, shape index: {}]
  %s2 = inlined_call_operand.vmem [shape: f32[1,2,1], index: 2, kind: output, shape index: {}]
  %s3 = sld [smem:[#allocation0]]
  $region34: #{tpu_custom_call.1} parent=0
    _
  %s5 = ssub.s32 1, %s3
  %s6 = scalar_select 0, %s5, %s3
  $region1: #{tpu_custom_call.1} parent=0
    #allocation3 [shape = 'u8[8192]{0}', space=vmem, size = 0x2000, scoped, tag = 'input window, operand 0, single buffered']
    #allocation4 [shape = 's32[1]{0}', space=sflag, size = 0x4, scoped, tag = 'scoped memory for tpu_custom_call.1']
    #allocation5 [shape = 'u8[8192]{0}', space=vmem, size = 0x2000, scoped, tag = 'input window, operand 1, single buffered']
    #allocation6 [shape = 's32[1]{0}', space=sflag, size = 0x4, scoped, tag = 'scoped memory for tpu_custom_call.1']
    %7 = vsyncpa [#allocation4], 0
    %8 = vsyncpa [#allocation6], 0
    // Predicated region
    $region2: #{tpu_custom_call.1} parent=1 // pred_check
      _
    $region3: #{tpu_custom_call.1} parent=1 // pred_check_branch
      %10 = sbr.rel (0) target = $region5
    $region4: #{tpu_custom_call.1} parent=1 // pred_region
      %s11 = sadd.s32 0, 0
      %s13 = ssub.s32 256, 256
      %14 = vsyncadd [#allocation4], %s13
      %s15 = smul.addr %s11, 128
      %s16 = scalar_lea.hbm %s0, %s15
      %s17 = sshll.u32 [#allocation3], 4
      %s18 = int_to_ptr.vmem [resolvable:$true] %s17
      %23 = dma.hbm_to_vmem [thread:$0]  %s16, 256, %s18, [#allocation4], 128, 128, 8
    $region5: #{tpu_custom_call.1} parent=1 // pred_fallthru
      _
    // Predicated region
    $region6: #{tpu_custom_call.1} parent=1 // pred_check
      _
    $region7: #{tpu_custom_call.1} parent=1 // pred_check_branch
      %25 = sbr.rel (0) target = $region9
    $region8: #{tpu_custom_call.1} parent=1 // pred_region
      %s26 = sadd.s32 0, 0
      %s28 = ssub.s32 256, 256
      %29 = vsyncadd [#allocation6], %s28
      %s30 = smul.addr %s26, 128
      %s31 = scalar_lea.hbm %s1, %s30
      %s32 = sshll.u32 [#allocation5], 4
      %s33 = int_to_ptr.vmem [resolvable:$true] %s32
      %38 = dma.hbm_to_vmem [thread:$0]  %s31, 256, %s33, [#allocation6], 128, 128, 8
    $region9: #{tpu_custom_call.1} parent=1 // pred_fallthru
      _
    // Predicated region
    $region10: #{tpu_custom_call.1} parent=1 // pred_check
      _
    $region11: #{tpu_custom_call.1} parent=1 // pred_check_branch
      %40 = sbr.rel (0) target = $region13
    $region12: #{tpu_custom_call.1} parent=1 // pred_region
      %41 = dma.done [#allocation4], 256
    $region13: #{tpu_custom_call.1} parent=1 // pred_fallthru
      _
    // Predicated region
    $region14: #{tpu_custom_call.1} parent=1 // pred_check
      _
    $region15: #{tpu_custom_call.1} parent=1 // pred_check_branch
      %43 = sbr.rel (0) target = $region17
    $region16: #{tpu_custom_call.1} parent=1 // pred_region
      %44 = dma.done [#allocation6], 256
    $region17: #{tpu_custom_call.1} parent=1 // pred_fallthru
      _
    %s45 = sadd.s32 0, 0
    %s46 = sadd.s32 0, 0
    %p47 = scmp.eq.s32.totalorder 0, 0
    // Predicated region
    $region18: #{tpu_custom_call.1} parent=1 // pred_check
      %p48 = pneg %p47
    $region19: #{tpu_custom_call.1} parent=1 // pred_check_branch
      %50 = sbr.rel (%p48) target = $region21
    $region20: #{tpu_custom_call.1} parent=1 // pred_region
      %51 = vst [vmem:[#allocation2] sm:$0x3] 0.0
    $region21: #{tpu_custom_call.1} parent=1 // pred_fallthru
      _
    %v52 = vld [vmem:[#allocation3] sm:$0xff]
    %v53 = vld [vmem:[#allocation3 + $0x8] sm:$0xff]
    %v54 = vld [vmem:[#allocation5] sm:$0xff]
    %v55 = vld [vmem:[#allocation5 + $0x8] sm:$0xff]
    %v56 = vsub.f32 %v52, %v54
    %v57 = vsub.f32 %v53, %v55
    %v58 = vld [vmem:[#allocation2] sm:$0x3]
    %v59 = vmul.f32 %v56, %v56
    %v60 = vmul.f32 %v57, %v57
    %v61 = vrot.slane %v59, 4
    %v62 = vadd.f32 %v59, %v61
    %v63 = vrot.slane %v62, 2
    %v64 = vadd.f32 %v62, %v63
    %v65 = vrot.slane %v64, 1
    %v66 = vadd.f32 %v64, %v65
    %v67 = vrot.slane %v60, 4
    %v68 = vadd.f32 %v60, %v67
    %v69 = vrot.slane %v68, 2
    %v70 = vadd.f32 %v68, %v69
    %v71 = vrot.slane %v70, 1
    %v72 = vadd.f32 %v70, %v71
    %vm75 = vcmask 1041409
    %v76 = vsel %vm75, %v72, %v66
    %v78 = vadd.f32 %v58, %v76
    %79 = vst [vmem:[#allocation2] sm:$0x3] %v78
    // Predicated region
    $region22: #{tpu_custom_call.1} parent=1 // pred_check
      %p80 = pneg %p47
    $region23: #{tpu_custom_call.1} parent=1 // pred_check_branch
      %82 = sbr.rel (%p80) target = $region25
    $region24: #{tpu_custom_call.1} parent=1 // pred_region
      %v83 = vld [vmem:[#allocation2] sm:$0x3]
      %vm84 = vcmask 1041408
      %v85 = vsel %vm84, %v83, 0.0
      %86 = vadd.xlane.f32.xlu0 %v85
      %v87 = vpop.xlane.xlu0 %86
      %vm88 = vcmask 1024
      %89 = vst.msk [vmem:[%s2] sm:$0x3] %vm88, %v87
    $region25: #{tpu_custom_call.1} parent=1 // pred_fallthru
      _
    // Predicated region
    $region26: #{tpu_custom_call.1} parent=1 // pred_check
      _
    $region27: #{tpu_custom_call.1} parent=1 // pred_check_branch
      %91 = sbr.rel (0) target = $region29
    $region28: #{tpu_custom_call.1} parent=1 // pred_region
      _
    $region29: #{tpu_custom_call.1} parent=1 // pred_fallthru
      _
    // Predicated region
    $region30: #{tpu_custom_call.1} parent=1 // pred_check
      _
    $region31: #{tpu_custom_call.1} parent=1 // pred_check_branch
      %93 = sbr.rel (0) target = $region33
    $region32: #{tpu_custom_call.1} parent=1 // pred_region
      _
    $region33: #{tpu_custom_call.1} parent=1 // pred_fallthru
      _
    %94 = vsyncpa [#allocation4], 1
    %95 = vsyncpa [#allocation6], 1

</llo_original>
